<compile_context>
chip_gen: v6e
topology: v6e:2x2x1
jax: 0.10.0
libtpu: 0.0.40
codegen_flags: <defaults>
</compile_context>

<pallas_src>
import functools

import jax
import jax.numpy as jnp
from jax.experimental import pallas as pl
from jax.experimental.pallas import tpu as pltpu


def _round_up(x, m):
    return ((x + m - 1) // m) * m


# ----------------------------------------------------------------------------
# Fused edge kernel:
#   comp = src - rel ; y = comp @ [W_I | W_O] + [b_I | b_O]
#   sel  = where(dir_mask, y[:, :D], y[:, D:]) * scale      (scale = 1/deg[dst],
#                                                            0 for padded edges)
#   out[dst] += sel                                          (scatter-add)
# Output block (N_dst, D) is revisited across the edge-tile grid axis and stays
# resident in VMEM (accumulator pattern).
# ----------------------------------------------------------------------------
def _edge_agg_kernel(dst_ref,               # SMEM (E_pad,) int32  (scalar prefetch)
                     src_ref, rel_ref,      # VMEM (TE, D) bf16
                     mask_ref, scale_ref,   # VMEM (TE, 1) f32
                     wcat_ref, bcat_ref,    # VMEM (D, 2D) bf16, (1, 2D) f32
                     out_ref,               # VMEM (N_dst, D) f32 (revisited)
                     sel_ref):              # scratch VMEM (TE, D) f32
    t = pl.program_id(0)

    @pl.when(t == 0)
    def _init():
        out_ref[...] = jnp.zeros_like(out_ref)

    te, d = src_ref.shape
    comp = src_ref[...] - rel_ref[...]                                   # (TE, D) bf16
    y = jnp.dot(comp, wcat_ref[...],
                preferred_element_type=jnp.float32) + bcat_ref[...]      # (TE, 2D) f32
    proj_i = y[:, :d]
    proj_o = y[:, d:]
    sel = jnp.where(mask_ref[...] > 0.5, proj_i, proj_o) * scale_ref[...]
    sel_ref[...] = sel

    base = t * te

    def body(i, carry):
        dst = dst_ref[base + i]
        row = sel_ref[pl.ds(i, 1), :]
        out_ref[pl.ds(dst, 1), :] = out_ref[pl.ds(dst, 1), :] + row
        return carry

    jax.lax.fori_loop(0, te, body, 0)


def edge_project_aggregate(edge_dst, src_h, rel_h, mask, scale, w_cat, b_cat,
                           n_dst, edge_tile):
    e_pad, d = src_h.shape
    d2 = w_cat.shape[1]
    return pl.pallas_call(
        _edge_agg_kernel,
        grid_spec=pltpu.PrefetchScalarGridSpec(
            num_scalar_prefetch=1,
            grid=(e_pad // edge_tile,),
            in_specs=[
                pl.BlockSpec((edge_tile, d), lambda t, dst: (t, 0)),
                pl.BlockSpec((edge_tile, d), lambda t, dst: (t, 0)),
                pl.BlockSpec((edge_tile, 1), lambda t, dst: (t, 0)),
                pl.BlockSpec((edge_tile, 1), lambda t, dst: (t, 0)),
                pl.BlockSpec((d, d2), lambda t, dst: (0, 0)),
                pl.BlockSpec((1, d2), lambda t, dst: (0, 0)),
            ],
            out_specs=pl.BlockSpec((n_dst, d), lambda t, dst: (0, 0)),
            scratch_shapes=[pltpu.VMEM((edge_tile, d), jnp.float32)],
        ),
        out_shape=jax.ShapeDtypeStruct((n_dst, d), jnp.float32),
        compiler_params=pltpu.CompilerParams(
            dimension_semantics=("arbitrary",),   # output block is revisited
            vmem_limit_bytes=32 * 1024 * 1024,
        ),
    )(edge_dst, src_h, rel_h, mask, scale, w_cat, b_cat)


# ----------------------------------------------------------------------------
# Row-tiled linear: out = act(x @ w + b), bf16 operands / f32 accumulation.
# ----------------------------------------------------------------------------
def _linear_kernel(x_ref, w_ref, b_ref, o_ref, *, act):
    y = jnp.dot(x_ref[...].astype(jnp.bfloat16), w_ref[...],
                preferred_element_type=jnp.float32) + b_ref[...]
    if act == "sigmoid":
        y = jax.nn.sigmoid(y)
    o_ref[...] = y.astype(o_ref.dtype)


def pallas_linear(x, w, b, act="none", row_tile=256):
    m, k = x.shape
    n = w.shape[1]
    tm = min(row_tile, _round_up(m, 8))
    m_pad = _round_up(m, tm)
    if m_pad != m:
        x = jnp.pad(x, ((0, m_pad - m), (0, 0)))
    out = pl.pallas_call(
        functools.partial(_linear_kernel, act=act),
        grid=(m_pad // tm,),
        in_specs=[
            pl.BlockSpec((tm, k), lambda i: (i, 0)),
            pl.BlockSpec((k, n), lambda i: (0, 0)),
            pl.BlockSpec((1, n), lambda i: (0, 0)),
        ],
        out_specs=pl.BlockSpec((tm, n), lambda i: (i, 0)),
        out_shape=jax.ShapeDtypeStruct((m_pad, n), jnp.float32),
        compiler_params=pltpu.CompilerParams(
            dimension_semantics=("parallel",),
            vmem_limit_bytes=32 * 1024 * 1024,
        ),
    )(x, w.astype(jnp.bfloat16), b.reshape(1, n).astype(jnp.float32))
    return out[:m]


# ----------------------------------------------------------------------------
# CompGCN forward (light glue in JAX, hot paths in Pallas)
# ----------------------------------------------------------------------------
def comp_gcn_forward(params, blocks, num_rels, *, edge_tile=256):
    # index_select(entity, 0, blocks[0].srcdata['id'])
    n_feats = jnp.take(params["entity"], blocks[0]["src_ids"], axis=0)
    r_feats = params["rel_embeds"]

    for block, layer in zip(blocks, params["layers"]):
        etype = block["etype"]
        edge_src = block["edge_src"]
        edge_dst = block["edge_dst"]
        n_dst = int(block["num_dst"])
        e = etype.shape[0]
        d = n_feats.shape[1]

        # Gathers (XLA glue); edge streams cast to bf16 (halves dominant DMA).
        src_h = jnp.take(n_feats, edge_src, axis=0).astype(jnp.bfloat16)   # (E, D)
        rel_h = jnp.take(r_feats, etype, axis=0).astype(jnp.bfloat16)      # (E, D)

        # (E,1) direction mask + per-edge mean scale (zero in-degree dsts stay 0).
        mask = (etype < (num_rels // 2)).astype(jnp.float32)[:, None]
        deg = jnp.zeros((n_dst,), jnp.float32).at[edge_dst].add(1.0)
        scale = (1.0 / jnp.maximum(deg, 1.0))[edge_dst][:, None]

        # Dual projection fused into one matmul against [W_I | W_O].
        w_cat = jnp.concatenate([layer["W_I"], layer["W_O"]], axis=1).astype(jnp.bfloat16)
        b_cat = jnp.concatenate([layer["b_I"], layer["b_O"]]).reshape(1, 2 * d)

        # Pad the edge axis to a tile multiple; padded edges carry scale 0.
        te = min(edge_tile, _round_up(e, 8))
        e_pad = _round_up(e, te)
        pad = e_pad - e
        if pad:
            src_h = jnp.pad(src_h, ((0, pad), (0, 0)))
            rel_h = jnp.pad(rel_h, ((0, pad), (0, 0)))
            mask = jnp.pad(mask, ((0, pad), (0, 0)))
            scale = jnp.pad(scale, ((0, pad), (0, 0)))
            edge_dst = jnp.pad(edge_dst, (0, pad))

        # Fused Pallas kernel: composition + projection + select + segment-mean.
        n_feats = edge_project_aggregate(edge_dst.astype(jnp.int32),
                                         src_h, rel_h, mask, scale,
                                         w_cat, b_cat, n_dst, te)          # (N_dst, D)

        # relation update W_R(r_feats) (Pallas)
        r_feats = pallas_linear(r_feats, layer["W_R"], layer["b_R"])
        # per-layer dropouts are identity in eval mode

    # predict = fc(n_feats).sigmoid()  (Pallas, fused sigmoid)
    return pallas_linear(n_feats, params["fc_w"], params["fc_b"], act="sigmoid")


# ----------------------------------------------------------------------------
# Deterministic parameter / input construction
# ----------------------------------------------------------------------------
def make_params(key, num_nodes, num_rels, num_types, embed_dim, num_layers):
    keys = jax.random.split(key, 4 + 6 * num_layers)
    D = embed_dim
    lim = 10.0 / D
    params = {
        "entity": jax.random.uniform(keys[0], (num_nodes, D), jnp.float32, -lim, lim),
        "rel_embeds": jax.random.uniform(keys[1], (num_rels, D), jnp.float32, -lim, lim),
        "fc_w": jax.random.uniform(keys[2], (D, num_types), jnp.float32,
                                   -1.0 / jnp.sqrt(D), 1.0 / jnp.sqrt(D)),
        "fc_b": jax.random.uniform(keys[3], (num_types,), jnp.float32,
                                   -1.0 / jnp.sqrt(D), 1.0 / jnp.sqrt(D)),
        "layers": [],
    }
    xav = (2.0 ** 0.5) * (6.0 / (D + D)) ** 0.5          # xavier_uniform, gain=relu
    bb = 1.0 / (D ** 0.5)
    for i in range(num_layers):
        k = keys[4 + 6 * i: 4 + 6 * (i + 1)]
        params["layers"].append({
            "W_I": jax.random.uniform(k[0], (D, D), jnp.float32, -xav, xav),
            "b_I": jax.random.uniform(k[1], (D,), jnp.float32, -bb, bb),
            "W_O": jax.random.uniform(k[2], (D, D), jnp.float32, -xav, xav),
            "b_O": jax.random.uniform(k[3], (D,), jnp.float32, -bb, bb),
            "W_R": jax.random.uniform(k[4], (D, D), jnp.float32, -bb, bb),
            "b_R": jax.random.uniform(k[5], (D,), jnp.float32, -bb, bb),
        })
    return params


def make_block(key, num_nodes, num_rels, n_src, n_dst, n_edges):
    k0, k1, k2, k3 = jax.random.split(key, 4)
    return {
        "src_ids": jax.random.randint(k0, (n_src,), 0, num_nodes, dtype=jnp.int32),
        "edge_src": jax.random.randint(k1, (n_edges,), 0, n_src, dtype=jnp.int32),
        "edge_dst": jax.random.randint(k2, (n_edges,), 0, n_dst, dtype=jnp.int32),
        "etype": jax.random.randint(k3, (n_edges,), 0, num_rels, dtype=jnp.int32),
        "num_dst": n_dst,
    }


if __name__ == "__main__":
    # Small but lane-dense shapes (feature axes = 128 to fill vreg lanes / MXU N).
    num_nodes, num_rels, num_types, embed_dim = 512, 16, 128, 128
    num_layers = 1
    n_src, n_dst, n_edges = 256, 128, 1000   # non-multiple E exercises edge padding

    root = jax.random.PRNGKey(0)
    k_params, k_block = jax.random.split(root)

    params = make_params(k_params, num_nodes, num_rels, num_types, embed_dim, num_layers)
    blocks = [make_block(k_block, num_nodes, num_rels, n_src, n_dst, n_edges)]

    predict = comp_gcn_forward(params, blocks, num_rels, edge_tile=256)
    predict = jax.block_until_ready(predict)

    assert predict.shape == (n_dst, num_types)
    assert bool(jnp.all(jnp.isfinite(predict)))
    assert bool(jnp.all((predict >= 0.0) & (predict <= 1.0)))
    print("KERNEL_OK")
</pallas_src>

<mosaic_0001>
module attributes {stable_mosaic.version = 11 : i64} {
  func.func @_edge_agg_kernel(%arg0: i32, %arg1: memref<1024xi32, #tpu.memory_space<smem>>, %arg2: memref<256x128xbf16, #tpu.memory_space<vmem>>, %arg3: memref<256x128xbf16, #tpu.memory_space<vmem>>, %arg4: memref<256x1xf32, #tpu.memory_space<vmem>>, %arg5: memref<256x1xf32, #tpu.memory_space<vmem>>, %arg6: memref<128x256xbf16, #tpu.memory_space<vmem>>, %arg7: memref<1x256xf32, #tpu.memory_space<vmem>>, %arg8: memref<128x128xf32, #tpu.memory_space<vmem>>, %arg9: memref<256x128xf32, #tpu.memory_space<vmem>>) attributes {dimension_semantics = [#tpu.dimension_semantics<arbitrary>], iteration_bounds = array<i64: 4>, scalar_prefetch = 1 : i64, scratch_operands = 1 : i64, tpu.core_type = #tpu.core_type<tc>, window_params = [{transform_indices = @transform_0, window_bounds = array<i64: 256, 128>}, {transform_indices = @transform_1, window_bounds = array<i64: 256, 128>}, {transform_indices = @transform_2, window_bounds = array<i64: 256, 1>}, {transform_indices = @transform_3, window_bounds = array<i64: 256, 1>}, {pipeline_mode = #tpu.pipeline_mode<synchronous>, transform_indices = @transform_4, window_bounds = array<i64: 128, 256>}, {pipeline_mode = #tpu.pipeline_mode<synchronous>, transform_indices = @transform_5, window_bounds = array<i64: 1, 256>}, {pipeline_mode = #tpu.pipeline_mode<synchronous>, transform_indices = @transform_6, window_bounds = array<i64: 128, 128>}]} {
    %c0_i32 = arith.constant 0 : i32
    %0 = arith.cmpi eq, %arg0, %c0_i32 : i32
    %1 = arith.extui %0 : i1 to i32
    %c0_i32_0 = arith.constant 0 : i32
    %2 = arith.cmpi ne, %1, %c0_i32_0 : i32
    scf.if %2 {
      %cst_18 = arith.constant 0.000000e+00 : f32
      %25 = vector.broadcast %cst_18 : f32 to vector<128x128xf32>
      %c0_19 = arith.constant 0 : index
      %c0_20 = arith.constant 0 : index
      %26 = vector.load %arg8[%c0_19, %c0_20] : memref<128x128xf32, #tpu.memory_space<vmem>>, vector<128x128xf32>
      tpu.vector_store %arg8[%c0_19, %c0_20], %25 {strides = array<i32>} : memref<128x128xf32, #tpu.memory_space<vmem>>, vector<128x128xf32>,
    } else {
    }
    %c0 = arith.constant 0 : index
    %c0_1 = arith.constant 0 : index
    %3 = vector.load %arg2[%c0, %c0_1] : memref<256x128xbf16, #tpu.memory_space<vmem>>, vector<256x128xbf16>
    %c0_2 = arith.constant 0 : index
    %c0_3 = arith.constant 0 : index
    %4 = vector.load %arg3[%c0_2, %c0_3] : memref<256x128xbf16, #tpu.memory_space<vmem>>, vector<256x128xbf16>
    %5 = arith.subf %3, %4 : vector<256x128xbf16>
    %c0_4 = arith.constant 0 : index
    %c0_5 = arith.constant 0 : index
    %6 = vector.load %arg6[%c0_4, %c0_5] : memref<128x256xbf16, #tpu.memory_space<vmem>>, vector<128x256xbf16>
    %cst = arith.constant dense<0.000000e+00> : vector<256x256xf32>
    %7 = tpu.matmul %5, %6, %cst {dimension_numbers = #tpu.dot_dimension_numbers<[1], [0], [0], [1], [0, 0, 1, 1], [], []>} : vector<256x128xbf16>, vector<128x256xbf16>, vector<256x256xf32> -> vector<256x256xf32>
    %c0_6 = arith.constant 0 : index
    %c0_7 = arith.constant 0 : index
    %8 = vector.load %arg7[%c0_6, %c0_7] : memref<1x256xf32, #tpu.memory_space<vmem>>, vector<1x256xf32>
    %9 = vector.broadcast %8 : vector<1x256xf32> to vector<256x256xf32>
    %10 = arith.addf %7, %9 : vector<256x256xf32>
    %11 = vector.extract_strided_slice %10 {offsets = [0, 0], sizes = [256, 128], strides = [1, 1]} : vector<256x256xf32> to vector<256x128xf32>
    %12 = vector.extract_strided_slice %10 {offsets = [0, 128], sizes = [256, 128], strides = [1, 1]} : vector<256x256xf32> to vector<256x128xf32>
    %c0_8 = arith.constant 0 : index
    %c0_9 = arith.constant 0 : index
    %13 = vector.load %arg4[%c0_8, %c0_9] : memref<256x1xf32, #tpu.memory_space<vmem>>, vector<256x1xf32>
    %cst_10 = arith.constant 5.000000e-01 : f32
    %14 = vector.broadcast %cst_10 : f32 to vector<256x1xf32>
    %15 = arith.cmpf ogt, %13, %14 : vector<256x1xf32>
    %16 = vector.shape_cast %15 : vector<256x1xi1> to vector<256x1xi1>
    %17 = vector.broadcast %16 : vector<256x1xi1> to vector<256x128xi1>
    %18 = arith.select %17, %11, %12 : vector<256x128xi1>, vector<256x128xf32>
    %c0_11 = arith.constant 0 : index
    %c0_12 = arith.constant 0 : index
    %19 = vector.load %arg5[%c0_11, %c0_12] : memref<256x1xf32, #tpu.memory_space<vmem>>, vector<256x1xf32>
    %20 = vector.broadcast %19 : vector<256x1xf32> to vector<256x128xf32>
    %21 = arith.mulf %18, %20 : vector<256x128xf32>
    %c0_13 = arith.constant 0 : index
    %c0_14 = arith.constant 0 : index
    %22 = vector.load %arg9[%c0_13, %c0_14] : memref<256x128xf32, #tpu.memory_space<vmem>>, vector<256x128xf32>
    tpu.vector_store %arg9[%c0_13, %c0_14], %21 {strides = array<i32>} : memref<256x128xf32, #tpu.memory_space<vmem>>, vector<256x128xf32>,
    %c256_i32 = arith.constant 256 : i32
    %23 = arith.muli %arg0, %c256_i32 : i32
    %c0_i32_15 = arith.constant 0 : i32
    %c256_i32_16 = arith.constant 256 : i32
    %24 = arith.addi %c0_i32_15, %c256_i32_16 : i32
    %c1_i32 = arith.constant 1 : i32
    scf.for %arg10 = %c0_i32_15 to %24 step %c1_i32  : i32 {
      %25 = arith.addi %23, %arg10 : i32
      %26 = arith.index_cast %25 : i32 to index
      %27 = memref.load %arg1[%26] : memref<1024xi32, #tpu.memory_space<smem>>
      %28 = arith.index_cast %arg10 : i32 to index
      %c0_18 = arith.constant 0 : index
      %29 = vector.load %arg9[%28, %c0_18] : memref<256x128xf32, #tpu.memory_space<vmem>>, vector<1x128xf32>
      %30 = arith.index_cast %27 : i32 to index
      %c0_19 = arith.constant 0 : index
      %31 = vector.load %arg8[%30, %c0_19] : memref<128x128xf32, #tpu.memory_space<vmem>>, vector<1x128xf32>
      %32 = arith.addf %31, %29 : vector<1x128xf32>
      %33 = arith.index_cast %27 : i32 to index
      %c0_20 = arith.constant 0 : index
      %34 = vector.load %arg8[%33, %c0_20] : memref<128x128xf32, #tpu.memory_space<vmem>>, vector<1x128xf32>
      tpu.vector_store %arg8[%33, %c0_20], %32 {strides = array<i32>} : memref<128x128xf32, #tpu.memory_space<vmem>>, vector<1x128xf32>,
    }
    %c256_i32_17 = arith.constant 256 : i32
    return
  }
  func.func @transform_0(%arg0: i32, %arg1: memref<1024xi32, #tpu.memory_space<smem>>) -> (i32, i32) {
    %c0_i32 = arith.constant 0 : i32
    %c0_i32_0 = arith.constant 0 : i32
    return %arg0, %c0_i32 : i32, i32
  }
  func.func @transform_1(%arg0: i32, %arg1: memref<1024xi32, #tpu.memory_space<smem>>) -> (i32, i32) {
    %c0_i32 = arith.constant 0 : i32
    %c0_i32_0 = arith.constant 0 : i32
    return %arg0, %c0_i32 : i32, i32
  }
  func.func @transform_2(%arg0: i32, %arg1: memref<1024xi32, #tpu.memory_space<smem>>) -> (i32, i32) {
    %c0_i32 = arith.constant 0 : i32
    %c0_i32_0 = arith.constant 0 : i32
    return %arg0, %c0_i32 : i32, i32
  }
  func.func @transform_3(%arg0: i32, %arg1: memref<1024xi32, #tpu.memory_space<smem>>) -> (i32, i32) {
    %c0_i32 = arith.constant 0 : i32
    %c0_i32_0 = arith.constant 0 : i32
    return %arg0, %c0_i32 : i32, i32
  }
  func.func @transform_4(%arg0: i32, %arg1: memref<1024xi32, #tpu.memory_space<smem>>) -> (i32, i32) {
    %c0_i32 = arith.constant 0 : i32
    %c0_i32_0 = arith.constant 0 : i32
    %c0_i32_1 = arith.constant 0 : i32
    return %c0_i32, %c0_i32_0 : i32, i32
  }
  func.func @transform_5(%arg0: i32, %arg1: memref<1024xi32, #tpu.memory_space<smem>>) -> (i32, i32) {
    %c0_i32 = arith.constant 0 : i32
    %c0_i32_0 = arith.constant 0 : i32
    %c0_i32_1 = arith.constant 0 : i32
    return %c0_i32, %c0_i32_0 : i32, i32
  }
  func.func @transform_6(%arg0: i32, %arg1: memref<1024xi32, #tpu.memory_space<smem>>) -> (i32, i32) {
    %c0_i32 = arith.constant 0 : i32
    %c0_i32_0 = arith.constant 0 : i32
    %c0_i32_1 = arith.constant 0 : i32
    return %c0_i32, %c0_i32_0 : i32, i32
  }
}

</mosaic_0001>

<llo_original>
// kernel: tpu_custom_call.1
$region0: #{tpu_custom_call.1}
  #allocation0 [shape = 'u32[]', space=smem, size = 0x4, offset = 0x4, fixed_abs, tag = 'smem constant byte address 0x4 - core index']
  #allocation1 [shape = 'u32[144,128]{1,0:T(1,128)}', space=vmem, size = 0x12000, scoped, tag = 'internal scratch']
  #allocation2 [shape = 'f32[256,128]{1,0:T(8,128)}', space=vmem, size = 0x20000, scoped, tag = 'scratch operand']
  #allocation3 [shape = 's32[1]{0}', space=sflag, size = 0x4, scoped, tag = 'scoped memory for tpu_custom_call.1']
  #allocation4 [shape = 'u8[4096]{0}', space=smem, size = 0x1000, scoped, tag = 'prefetched SMEM operand 0']
  %s0 = inlined_call_operand.vmem [shape: s32[1024], index: 0, kind: input, shape index: {}]
  %s1 = inlined_call_operand.vmem [shape: bf16[1024,128], index: 1, kind: input, shape index: {}]
  %s2 = inlined_call_operand.vmem [shape: bf16[1024,128], index: 2, kind: input, shape index: {}]
  %s3 = inlined_call_operand.vmem [shape: f32[1024,1], index: 3, kind: input, shape index: {}]
  %s4 = inlined_call_operand.vmem [shape: f32[1024,1], index: 4, kind: input, shape index: {}]
  %s5 = inlined_call_operand.vmem [shape: bf16[128,256], index: 5, kind: input, shape index: {}]
  %s6 = inlined_call_operand.vmem [shape: f32[1,256], index: 6, kind: input, shape index: {}]
  %s7 = inlined_call_operand.hbm [shape: f32[128,128], index: 7, kind: output, shape index: {}]
  %s8 = sld [smem:[#allocation0]]
  $region68: #{tpu_custom_call.1} parent=0
    _
  %s10 = ssub.s32 1, %s8
  %s11 = scalar_select 0, %s10, %s8
  %s12 = sshll.u32 %s0, 4
  %s13 = int_to_ptr.vmem [resolvable:$true] %s12
  %15 = dma.vmem_to_smem %s13, 128, [#allocation4], [#allocation3]
  %16 = dma.done [#allocation3], 128
  %17 = sfence
  $region1: #{tpu_custom_call.1} parent=0
    #allocation5 [shape = 'u8[65536]{0}', space=vmem, size = 0x10000, scoped, tag = 'output window, operand 0, single buffered']
    #allocation6 [shape = 's32[2]{0}', space=sflag, size = 0x8, scoped, tag = 'scoped memory for tpu_custom_call.1']
    %18 = vsyncpa [#allocation6], 0
    loop: start=0, step=1, limit=6
    $region2: #{tpu_custom_call.1} parent=1 // loop_pre_header
      _
    $region3: #{tpu_custom_call.1} parent=1 // loop_header
      %s20 = sphi 0, %s24
      %p21 = scmp.ge.s32.totalorder %s20, 6
      %s30 = sphi 0, %s32
      %s33 = sphi 0, %s30
      %s34 = sphi 0, %s33
      %s50 = sphi 0, %s34
      %s56 = sphi 0, %s58
      %s59 = sphi 0, %s56
      %s60 = sphi 0, %s59
      %s76 = sphi 0, %s60
      %s82 = sphi 0, %s84
      %s85 = sphi 0, %s82
      %s86 = sphi 0, %s85
      %s102 = sphi 0, %s86
      %s108 = sphi 0, %s110
      %s111 = sphi 0, %s108
      %s112 = sphi 0, %s111
      %s128 = sphi 0, %s112
      %s132 = sphi 0, %s132
      %s134 = sphi 0, %s132
      %s135 = sphi 0, %s134
      %s149 = sphi 0, %s135
      %s153 = sphi 0, %s153
      %s155 = sphi 0, %s153
      %s156 = sphi 0, %s155
      %s170 = sphi 0, %s156
      %s174 = sphi 0, %s174
      %s176 = sphi 0, %s174
      %s177 = sphi 0, %s176
      %s191 = sphi 0, %s177
    $region4: #{tpu_custom_call.1} parent=1 // loop_header_branch
      %23 = sbr.rel (%p21) target = $region8
    $region5: #{tpu_custom_call.1} parent=1 // loop_body
      %s25 = ssub.s32 %s20, 1
      %s26 = ssub.s32 %s20, 2
      %s27 = sadd.s32 %s20, 1
      %s28 = ssub.s32 %s20, %s27
      %p29 = scmp.eq.s32.totalorder %s28, 0
      %s31 = sadd.s32 %s30, 1
      %s32 = scalar_select %p29, %s30, %s31
      %p35 = pneg %p29
      %p36 = scmp.eq.s32.totalorder %s20, 3
      %p37 = por %p35, %p36
      %p38 = scmp.ne.s32.totalorder %s30, %s33
      %p39 = scmp.eq.s32.totalorder %s20, 0
      %p40 = por %p38, %p39
      %p41 = scmp.ne.s32.totalorder %s30, %s33
      %p42 = scmp.eq.s32.totalorder %s25, 3
      %p43 = por %p41, %p42
      %p44 = scmp.ne.s32.totalorder %s33, %s34
      %p45 = scmp.eq.s32.totalorder %s25, 0
      %p46 = por %p44, %p45
      %p47 = scmp.ne.s32.totalorder %s33, %s34
      %p48 = scmp.eq.s32.totalorder %s26, 3
      %p49 = por %p47, %p48
      %p51 = scmp.ne.s32.totalorder %s34, %s50
      %p52 = scmp.eq.s32.totalorder %s26, 0
      %p53 = por %p51, %p52
      %s54 = ssub.s32 %s20, %s27
      %p55 = scmp.eq.s32.totalorder %s54, 0
      %s57 = sadd.s32 %s56, 1
      %s58 = scalar_select %p55, %s56, %s57
      %p61 = pneg %p55
      %p62 = scmp.eq.s32.totalorder %s20, 3
      %p63 = por %p61, %p62
      %p64 = scmp.ne.s32.totalorder %s56, %s59
      %p65 = scmp.eq.s32.totalorder %s20, 0
      %p66 = por %p64, %p65
      %p67 = scmp.ne.s32.totalorder %s56, %s59
      %p68 = scmp.eq.s32.totalorder %s25, 3
      %p69 = por %p67, %p68
      %p70 = scmp.ne.s32.totalorder %s59, %s60
      %p71 = scmp.eq.s32.totalorder %s25, 0
      %p72 = por %p70, %p71
      %p73 = scmp.ne.s32.totalorder %s59, %s60
      %p74 = scmp.eq.s32.totalorder %s26, 3
      %p75 = por %p73, %p74
      %p77 = scmp.ne.s32.totalorder %s60, %s76
      %p78 = scmp.eq.s32.totalorder %s26, 0
      %p79 = por %p77, %p78
      %s80 = ssub.s32 %s20, %s27
      %p81 = scmp.eq.s32.totalorder %s80, 0
      %s83 = sadd.s32 %s82, 1
      %s84 = scalar_select %p81, %s82, %s83
      %p87 = pneg %p81
      %p88 = scmp.eq.s32.totalorder %s20, 3
      %p89 = por %p87, %p88
      %p90 = scmp.ne.s32.totalorder %s82, %s85
      %p91 = scmp.eq.s32.totalorder %s20, 0
      %p92 = por %p90, %p91
      %p93 = scmp.ne.s32.totalorder %s82, %s85
      %p94 = scmp.eq.s32.totalorder %s25, 3
      %p95 = por %p93, %p94
      %p96 = scmp.ne.s32.totalorder %s85, %s86
      %p97 = scmp.eq.s32.totalorder %s25, 0
      %p98 = por %p96, %p97
      %p99 = scmp.ne.s32.totalorder %s85, %s86
      %p100 = scmp.eq.s32.totalorder %s26, 3
      %p101 = por %p99, %p100
      %p103 = scmp.ne.s32.totalorder %s86, %s102
      %p104 = scmp.eq.s32.totalorder %s26, 0
      %p105 = por %p103, %p104
      %s106 = ssub.s32 %s20, %s27
      %p107 = scmp.eq.s32.totalorder %s106, 0
      %s109 = sadd.s32 %s108, 1
      %s110 = scalar_select %p107, %s108, %s109
      %p113 = pneg %p107
      %p114 = scmp.eq.s32.totalorder %s20, 3
      %p115 = por %p113, %p114
      %p116 = scmp.ne.s32.totalorder %s108, %s111
      %p117 = scmp.eq.s32.totalorder %s20, 0
      %p118 = por %p116, %p117
      %p119 = scmp.ne.s32.totalorder %s108, %s111
      %p120 = scmp.eq.s32.totalorder %s25, 3
      %p121 = por %p119, %p120
      %p122 = scmp.ne.s32.totalorder %s111, %s112
      %p123 = scmp.eq.s32.totalorder %s25, 0
      %p124 = por %p122, %p123
      %p125 = scmp.ne.s32.totalorder %s111, %s112
      %p126 = scmp.eq.s32.totalorder %s26, 3
      %p127 = por %p125, %p126
      %p129 = scmp.ne.s32.totalorder %s112, %s128
      %p130 = scmp.eq.s32.totalorder %s26, 0
      %p131 = por %p129, %p130
      %s133 = sadd.s32 %s132, 1
      %p136 = scmp.eq.s32.totalorder %s20, 3
      %p137 = scmp.ne.s32.totalorder %s132, %s134
      %p138 = scmp.eq.s32.totalorder %s20, 0
      %p139 = por %p137, %p138
      %p140 = scmp.ne.s32.totalorder %s132, %s134
      %p141 = scmp.eq.s32.totalorder %s25, 3
      %p142 = por %p140, %p141
      %p143 = scmp.ne.s32.totalorder %s134, %s135
      %p144 = scmp.eq.s32.totalorder %s25, 0
      %p145 = por %p143, %p144
      %p146 = scmp.ne.s32.totalorder %s134, %s135
      %p147 = scmp.eq.s32.totalorder %s26, 3
      %p148 = por %p146, %p147
      %p150 = scmp.ne.s32.totalorder %s135, %s149
      %p151 = scmp.eq.s32.totalorder %s26, 0
      %p152 = por %p150, %p151
      %s154 = sadd.s32 %s153, 1
      %p157 = scmp.eq.s32.totalorder %s20, 3
      %p158 = scmp.ne.s32.totalorder %s153, %s155
      %p159 = scmp.eq.s32.totalorder %s20, 0
      %p160 = por %p158, %p159
      %p161 = scmp.ne.s32.totalorder %s153, %s155
      %p162 = scmp.eq.s32.totalorder %s25, 3
      %p163 = por %p161, %p162
      %p164 = scmp.ne.s32.totalorder %s155, %s156
      %p165 = scmp.eq.s32.totalorder %s25, 0
      %p166 = por %p164, %p165
      %p167 = scmp.ne.s32.totalorder %s155, %s156
      %p168 = scmp.eq.s32.totalorder %s26, 3
      %p169 = por %p167, %p168
      %p171 = scmp.ne.s32.totalorder %s156, %s170
      %p172 = scmp.eq.s32.totalorder %s26, 0
      %p173 = por %p171, %p172
      %s175 = sadd.s32 %s174, 1
      %p178 = scmp.eq.s32.totalorder %s20, 3
      %p179 = scmp.ne.s32.totalorder %s174, %s176
      %p180 = scmp.eq.s32.totalorder %s20, 0
      %p181 = por %p179, %p180
      %p182 = scmp.ne.s32.totalorder %s174, %s176
      %p183 = scmp.eq.s32.totalorder %s25, 3
      %p184 = por %p182, %p183
      %p185 = scmp.ne.s32.totalorder %s176, %s177
      %p186 = scmp.eq.s32.totalorder %s25, 0
      %p187 = por %p185, %p186
      %p188 = scmp.ne.s32.totalorder %s176, %s177
      %p189 = scmp.eq.s32.totalorder %s26, 3
      %p190 = por %p188, %p189
      %p192 = scmp.ne.s32.totalorder %s177, %s191
      %p193 = scmp.eq.s32.totalorder %s26, 0
      %p194 = por %p192, %p193
      %p195 = scmp.le.s32.totalorder 1, %s20
      %p196 = scmp.lt.s32.totalorder %s20, 5
      %p197 = pnand %p195, %p196
      %p198 = pneg %p197
      // Predicated region
      $region9: #{tpu_custom_call.1} parent=5 // pred_check
        _
      $region10: #{tpu_custom_call.1} parent=5 // pred_check_branch
        %200 = sbr.rel (%p197) target = $region12
      $region11: #{tpu_custom_call.1} parent=5 // pred_region
        %s201 = ssub.s32 %s20, 1
        // Predicated region
        $region13: #{tpu_custom_call.1} parent=11 // pred_check
          %p202 = pneg %p145
        $region14: #{tpu_custom_call.1} parent=11 // pred_check_branch
          %204 = sbr.rel (%p202) target = $region16
        $region15: #{tpu_custom_call.1} parent=11 // pred_region
          _
        $region16: #{tpu_custom_call.1} parent=11 // pred_fallthru
          _
        // Predicated region
        $region17: #{tpu_custom_call.1} parent=11 // pred_check
          %p205 = pneg %p166
        $region18: #{tpu_custom_call.1} parent=11 // pred_check_branch
          %207 = sbr.rel (%p205) target = $region20
        $region19: #{tpu_custom_call.1} parent=11 // pred_region
          _
        $region20: #{tpu_custom_call.1} parent=11 // pred_fallthru
          _
      $region12: #{tpu_custom_call.1} parent=5 // pred_fallthru
        _
      %p208 = scmp.lt.s32.totalorder %s20, 4
      // Predicated region
      $region21: #{tpu_custom_call.1} parent=5 // pred_check
        %p209 = pneg %p208
      $region22: #{tpu_custom_call.1} parent=5 // pred_check_branch
        %211 = sbr.rel (%p209) target = $region24
      $region23: #{tpu_custom_call.1} parent=5 // pred_region
        // Predicated region
        $region25: #{tpu_custom_call.1} parent=23 // pred_check
          %p212 = pneg %p40
        $region26: #{tpu_custom_call.1} parent=23 // pred_check_branch
          %214 = sbr.rel (%p212) target = $region28
        $region27: #{tpu_custom_call.1} parent=23 // pred_region
          %s215 = smul.u32 32, %s20
          %p216 = scmp.lt.s32.totalorder %s215, 127
          %s217 = scalar_select %p216, %s215, 127
          %s218 = smul.addr %s217, 4
          %s219 = scalar_lea.vmem %s1, %s218
          %s220 = smul.u32 32, %s20
        $region28: #{tpu_custom_call.1} parent=23 // pred_fallthru
          _
        // Predicated region
        $region29: #{tpu_custom_call.1} parent=23 // pred_check
          %p221 = pneg %p66
        $region30: #{tpu_custom_call.1} parent=23 // pred_check_branch
          %223 = sbr.rel (%p221) target = $region32
        $region31: #{tpu_custom_call.1} parent=23 // pred_region
          %s224 = smul.u32 32, %s20
          %p225 = scmp.lt.s32.totalorder %s224, 127
          %s226 = scalar_select %p225, %s224, 127
          %s227 = smul.addr %s226, 4
          %s228 = scalar_lea.vmem %s2, %s227
          %s229 = smul.u32 32, %s20
        $region32: #{tpu_custom_call.1} parent=23 // pred_fallthru
          _
        // Predicated region
        $region33: #{tpu_custom_call.1} parent=23 // pred_check
          %p230 = pneg %p92
        $region34: #{tpu_custom_call.1} parent=23 // pred_check_branch
          %232 = sbr.rel (%p230) target = $region36
        $region35: #{tpu_custom_call.1} parent=23 // pred_region
          %s233 = smul.u32 32, %s20
          %p234 = scmp.lt.s32.totalorder %s233, 127
          %s235 = scalar_select %p234, %s233, 127
          %s236 = smul.addr %s235, 8
          %s237 = scalar_lea.vmem %s3, %s236
          %s238 = smul.u32 32, %s20
        $region36: #{tpu_custom_call.1} parent=23 // pred_fallthru
          _
        // Predicated region
        $region37: #{tpu_custom_call.1} parent=23 // pred_check
          %p239 = pneg %p118
        $region38: #{tpu_custom_call.1} parent=23 // pred_check_branch
          %241 = sbr.rel (%p239) target = $region40
        $region39: #{tpu_custom_call.1} parent=23 // pred_region
          %s242 = smul.u32 32, %s20
          %p243 = scmp.lt.s32.totalorder %s242, 127
          %s244 = scalar_select %p243, %s242, 127
          %s245 = smul.addr %s244, 8
          %s246 = scalar_lea.vmem %s4, %s245
          %s247 = smul.u32 32, %s20
        $region40: #{tpu_custom_call.1} parent=23 // pred_fallthru
          _
      $region24: #{tpu_custom_call.1} parent=5 // pred_fallthru
        _
      %p248 = scmp.le.s32.totalorder 1, %s20
      %p249 = scmp.lt.s32.totalorder %s20, 5
      %p250 = pnand %p248, %p249
      %p251 = pneg %p250
      // Predicated region
      $region41: #{tpu_custom_call.1} parent=5 // pred_check
        _
      $region42: #{tpu_custom_call.1} parent=5 // pred_check_branch
        %253 = sbr.rel (%p250) target = $region44
      $region43: #{tpu_custom_call.1} parent=5 // pred_region
        %s254 = ssub.s32 %s20, 1
        %s255 = smul.u32 32, %s25
        %p256 = scmp.lt.s32.totalorder %s255, 127
        %s257 = scalar_select %p256, %s255, 127
        %s258 = smul.addr %s257, 4
        %s259 = scalar_lea.vmem %s1, %s258
        %p260 = pneg %p46
        %p261 = pneg %p43
        %s262 = smul.u32 32, %s25
        %p263 = scmp.lt.s32.totalorder %s262, 127
        %s264 = scalar_select %p263, %s262, 127
        %s265 = smul.addr %s264, 4
        %s266 = scalar_lea.vmem %s2, %s265
        %p267 = pneg %p72
        %p268 = pneg %p69
        %s269 = smul.u32 32, %s25
        %p270 = scmp.lt.s32.totalorder %s269, 127
        %s271 = scalar_select %p270, %s269, 127
        %s272 = smul.addr %s271, 8
        %s273 = scalar_lea.vmem %s3, %s272
        %p274 = pneg %p98
        %p275 = pneg %p95
        %s276 = smul.u32 32, %s25
        %p277 = scmp.lt.s32.totalorder %s276, 127
        %s278 = scalar_select %p277, %s276, 127
        %s279 = smul.addr %s278, 8
        %s280 = scalar_lea.vmem %s4, %s279
        %p281 = pneg %p124
        %p282 = pneg %p121
        %p283 = pneg %p145
        %p284 = pneg %p142
        %p285 = pneg %p166
        %p286 = pneg %p163
        %p287 = pneg %p187
        %p288 = pneg %p184
        %s289 = smul.u32 32, %s25
        %p290 = scmp.lt.s32.totalorder %s289, 127
        %s291 = scalar_select %p290, %s289, 127
        %s292 = smul.addr %s291, 4
        %s293 = scalar_lea.vmem %s1, %s292
        %s294 = smul.u32 32, %s25
        %s295 = smul.u32 32, %s25
        %p296 = scmp.lt.s32.totalorder %s295, 127
        %s297 = scalar_select %p296, %s295, 127
        %s298 = smul.addr %s297, 4
        %s299 = scalar_lea.vmem %s2, %s298
        %s300 = smul.u32 32, %s25
        %s301 = smul.u32 32, %s25
        %p302 = scmp.lt.s32.totalorder %s301, 127
        %s303 = scalar_select %p302, %s301, 127
        %s304 = smul.addr %s303, 8
        %s305 = scalar_lea.vmem %s3, %s304
        %s306 = smul.u32 32, %s25
        %s307 = smul.u32 32, %s25
        %p308 = scmp.lt.s32.totalorder %s307, 127
        %s309 = scalar_select %p308, %s307, 127
        %s310 = smul.addr %s309, 8
        %s311 = scalar_lea.vmem %s4, %s310
        %s312 = smul.u32 32, %s25
        %p314 = scmp.eq.s32.totalorder %s25, 0
        // Predicated region
        $region45: #{tpu_custom_call.1} parent=43 // pred_check
          %p315 = pneg %p314
        $region46: #{tpu_custom_call.1} parent=43 // pred_check_branch
          %317 = sbr.rel (%p315) target = $region48
        $region47: #{tpu_custom_call.1} parent=43 // pred_region
          %318 = vst [vmem:[#allocation5] sm:$0xff] 0.0
          %319 = vst [vmem:[#allocation5 + $0x8] sm:$0xff] 0.0
          %320 = vst [vmem:[#allocation5 + $0x10] sm:$0xff] 0.0
          %321 = vst [vmem:[#allocation5 + $0x18] sm:$0xff] 0.0
          %322 = vst [vmem:[#allocation5 + $0x20] sm:$0xff] 0.0
          %323 = vst [vmem:[#allocation5 + $0x28] sm:$0xff] 0.0
          %324 = vst [vmem:[#allocation5 + $0x30] sm:$0xff] 0.0
          %325 = vst [vmem:[#allocation5 + $0x38] sm:$0xff] 0.0
          %326 = vst [vmem:[#allocation5 + $0x40] sm:$0xff] 0.0
          %327 = vst [vmem:[#allocation5 + $0x48] sm:$0xff] 0.0
          %328 = vst [vmem:[#allocation5 + $0x50] sm:$0xff] 0.0
          %329 = vst [vmem:[#allocation5 + $0x58] sm:$0xff] 0.0
          %330 = vst [vmem:[#allocation5 + $0x60] sm:$0xff] 0.0
          %331 = vst [vmem:[#allocation5 + $0x68] sm:$0xff] 0.0
          %332 = vst [vmem:[#allocation5 + $0x70] sm:$0xff] 0.0
          %333 = vst [vmem:[#allocation5 + $0x78] sm:$0xff] 0.0
        $region48: #{tpu_custom_call.1} parent=43 // pred_fallthru
          _
        %v334 = vld [vmem:[%s293] sm:$0xf]
        %v335 = vld [vmem:[%s293 + $0x4] sm:$0xf]
        %v336 = vld [vmem:[%s293 + $0x8] sm:$0xf]
        %v337 = vld [vmem:[%s293 + $0xc] sm:$0xf]
        %v338 = vld [vmem:[%s293 + $0x10] sm:$0xf]
        %v339 = vld [vmem:[%s293 + $0x14] sm:$0xf]
        %v340 = vld [vmem:[%s293 + $0x18] sm:$0xf]
        %v341 = vld [vmem:[%s293 + $0x1c] sm:$0xf]
        %v342 = vld [vmem:[%s293 + $0x20] sm:$0xf]
        %v343 = vld [vmem:[%s293 + $0x24] sm:$0xf]
        %v344 = vld [vmem:[%s293 + $0x28] sm:$0xf]
        %v345 = vld [vmem:[%s293 + $0x2c] sm:$0xf]
        %v346 = vld [vmem:[%s293 + $0x30] sm:$0xf]
        %v347 = vld [vmem:[%s293 + $0x34] sm:$0xf]
        %v348 = vld [vmem:[%s293 + $0x38] sm:$0xf]
        %v349 = vld [vmem:[%s293 + $0x3c] sm:$0xf]
        %v350 = vld [vmem:[%s293 + $0x40] sm:$0xf]
        %v351 = vld [vmem:[%s293 + $0x44] sm:$0xf]
        %v352 = vld [vmem:[%s293 + $0x48] sm:$0xf]
        %v353 = vld [vmem:[%s293 + $0x4c] sm:$0xf]
        %v354 = vld [vmem:[%s293 + $0x50] sm:$0xf]
        %v355 = vld [vmem:[%s293 + $0x54] sm:$0xf]
        %v356 = vld [vmem:[%s293 + $0x58] sm:$0xf]
        %v357 = vld [vmem:[%s293 + $0x5c] sm:$0xf]
        %v358 = vld [vmem:[%s293 + $0x60] sm:$0xf]
        %v359 = vld [vmem:[%s293 + $0x64] sm:$0xf]
        %v360 = vld [vmem:[%s293 + $0x68] sm:$0xf]
        %v361 = vld [vmem:[%s293 + $0x6c] sm:$0xf]
        %v362 = vld [vmem:[%s293 + $0x70] sm:$0xf]
        %v363 = vld [vmem:[%s293 + $0x74] sm:$0xf]
        %v364 = vld [vmem:[%s293 + $0x78] sm:$0xf]
        %v365 = vld [vmem:[%s293 + $0x7c] sm:$0xf]
        %v366 = vld [vmem:[%s299] sm:$0xf]
        %v367 = vld [vmem:[%s299 + $0x4] sm:$0xf]
        %v368 = vld [vmem:[%s299 + $0x8] sm:$0xf]
        %v369 = vld [vmem:[%s299 + $0xc] sm:$0xf]
        %v370 = vld [vmem:[%s299 + $0x10] sm:$0xf]
        %v371 = vld [vmem:[%s299 + $0x14] sm:$0xf]
        %v372 = vld [vmem:[%s299 + $0x18] sm:$0xf]
        %v373 = vld [vmem:[%s299 + $0x1c] sm:$0xf]
        %v374 = vld [vmem:[%s299 + $0x20] sm:$0xf]
        %v375 = vld [vmem:[%s299 + $0x24] sm:$0xf]
        %v376 = vld [vmem:[%s299 + $0x28] sm:$0xf]
        %v377 = vld [vmem:[%s299 + $0x2c] sm:$0xf]
        %v378 = vld [vmem:[%s299 + $0x30] sm:$0xf]
        %v379 = vld [vmem:[%s299 + $0x34] sm:$0xf]
        %v380 = vld [vmem:[%s299 + $0x38] sm:$0xf]
        %v381 = vld [vmem:[%s299 + $0x3c] sm:$0xf]
        %v382 = vld [vmem:[%s299 + $0x40] sm:$0xf]
        %v383 = vld [vmem:[%s299 + $0x44] sm:$0xf]
        %v384 = vld [vmem:[%s299 + $0x48] sm:$0xf]
        %v385 = vld [vmem:[%s299 + $0x4c] sm:$0xf]
        %v386 = vld [vmem:[%s299 + $0x50] sm:$0xf]
        %v387 = vld [vmem:[%s299 + $0x54] sm:$0xf]
        %v388 = vld [vmem:[%s299 + $0x58] sm:$0xf]
        %v389 = vld [vmem:[%s299 + $0x5c] sm:$0xf]
        %v390 = vld [vmem:[%s299 + $0x60] sm:$0xf]
        %v391 = vld [vmem:[%s299 + $0x64] sm:$0xf]
        %v392 = vld [vmem:[%s299 + $0x68] sm:$0xf]
        %v393 = vld [vmem:[%s299 + $0x6c] sm:$0xf]
        %v394 = vld [vmem:[%s299 + $0x70] sm:$0xf]
        %v395 = vld [vmem:[%s299 + $0x74] sm:$0xf]
        %v396 = vld [vmem:[%s299 + $0x78] sm:$0xf]
        %v397 = vld [vmem:[%s299 + $0x7c] sm:$0xf]
        %v398 = vsub.bf16 %v334, %v366
        %v399 = vsub.bf16 %v335, %v367
        %v400 = vsub.bf16 %v336, %v368
        %v401 = vsub.bf16 %v337, %v369
        %v402 = vsub.bf16 %v338, %v370
        %v403 = vsub.bf16 %v339, %v371
        %v404 = vsub.bf16 %v340, %v372
        %v405 = vsub.bf16 %v341, %v373
        %v406 = vsub.bf16 %v342, %v374
        %v407 = vsub.bf16 %v343, %v375
        %v408 = vsub.bf16 %v344, %v376
        %v409 = vsub.bf16 %v345, %v377
        %v410 = vsub.bf16 %v346, %v378
        %v411 = vsub.bf16 %v347, %v379
        %v412 = vsub.bf16 %v348, %v380
        %v413 = vsub.bf16 %v349, %v381
        %v414 = vsub.bf16 %v350, %v382
        %v415 = vsub.bf16 %v351, %v383
        %v416 = vsub.bf16 %v352, %v384
        %v417 = vsub.bf16 %v353, %v385
        %v418 = vsub.bf16 %v354, %v386
        %v419 = vsub.bf16 %v355, %v387
        %v420 = vsub.bf16 %v356, %v388
        %v421 = vsub.bf16 %v357, %v389
        %v422 = vsub.bf16 %v358, %v390
        %v423 = vsub.bf16 %v359, %v391
        %v424 = vsub.bf16 %v360, %v392
        %v425 = vsub.bf16 %v361, %v393
        %v426 = vsub.bf16 %v362, %v394
        %v427 = vsub.bf16 %v363, %v395
        %v428 = vsub.bf16 %v364, %v396
        %v429 = vsub.bf16 %v365, %v397
        %v430 = vld [vmem:[%s5] sm:$0xff]
        %v431 = vld [vmem:[%s5 + $0x8] sm:$0xff]
        %v432 = vld [vmem:[%s5 + $0x10] sm:$0xff]
        %v433 = vld [vmem:[%s5 + $0x18] sm:$0xff]
        %v434 = vld [vmem:[%s5 + $0x20] sm:$0xff]
        %v435 = vld [vmem:[%s5 + $0x28] sm:$0xff]
        %v436 = vld [vmem:[%s5 + $0x30] sm:$0xff]
        %v437 = vld [vmem:[%s5 + $0x38] sm:$0xff]
        %v438 = vld [vmem:[%s5 + $0x40] sm:$0xff]
        %v439 = vld [vmem:[%s5 + $0x48] sm:$0xff]
        %v440 = vld [vmem:[%s5 + $0x50] sm:$0xff]
        %v441 = vld [vmem:[%s5 + $0x58] sm:$0xff]
        %v442 = vld [vmem:[%s5 + $0x60] sm:$0xff]
        %v443 = vld [vmem:[%s5 + $0x68] sm:$0xff]
        %v444 = vld [vmem:[%s5 + $0x70] sm:$0xff]
        %v445 = vld [vmem:[%s5 + $0x78] sm:$0xff]
        %v446 = vld [vmem:[%s6] sm:$0x3]
        %v448 = vlaneseq
        %v449 = vshrl.u32 %v448, 7
        %v450 = vsub.s32 0, %v449
        %v451 = vrot.slane %v446, %v450
        %v452 = vlaneseq
        %v453 = vshrl.u32 %v452, 7
        %v454 = vsub.s32 1, %v453
        %v455 = vrot.slane %v446, %v454
        %v490 = vunpack.c.l.b16 %v398
        %v491 = vunpack.c.l.b16 %v399
        %v492 = vunpack.c.l.b16 %v400
        %v493 = vunpack.c.l.b16 %v401
        %v494 = vunpack.c.l.b16 %v402
        %v495 = vunpack.c.l.b16 %v403
        %v496 = vunpack.c.l.b16 %v404
        %v497 = vunpack.c.l.b16 %v405
        %v498 = vunpack.c.l.b16 %v406
        %v499 = vunpack.c.l.b16 %v407
        %v500 = vunpack.c.l.b16 %v408
        %v501 = vunpack.c.l.b16 %v409
        %v502 = vunpack.c.l.b16 %v410
        %v503 = vunpack.c.l.b16 %v411
        %v504 = vunpack.c.l.b16 %v412
        %v505 = vunpack.c.l.b16 %v413
        %v506 = vunpack.c.l.b16 %v414
        %v507 = vunpack.c.l.b16 %v415
        %v508 = vunpack.c.l.b16 %v416
        %v509 = vunpack.c.l.b16 %v417
        %v510 = vunpack.c.l.b16 %v418
        %v511 = vunpack.c.l.b16 %v419
        %v512 = vunpack.c.l.b16 %v420
        %v513 = vunpack.c.l.b16 %v421
        %v514 = vunpack.c.l.b16 %v422
        %v515 = vunpack.c.l.b16 %v423
        %v516 = vunpack.c.l.b16 %v424
        %v517 = vunpack.c.l.b16 %v425
        %v518 = vunpack.c.l.b16 %v426
        %v519 = vunpack.c.l.b16 %v427
        %v520 = vunpack.c.l.b16 %v428
        %v521 = vunpack.c.l.b16 %v429
        %v522 = vpack.c.b16 %v491, %v490
        %v523 = vpack.c.b16 %v493, %v492
        %v524 = vpack.c.b16 %v495, %v494
        %v525 = vpack.c.b16 %v497, %v496
        %v526 = vpack.c.b16 %v499, %v498
        %v527 = vpack.c.b16 %v501, %v500
        %v528 = vpack.c.b16 %v503, %v502
        %v529 = vpack.c.b16 %v505, %v504
        %v530 = vpack.c.b16 %v507, %v506
        %v531 = vpack.c.b16 %v509, %v508
        %v532 = vpack.c.b16 %v511, %v510
        %v533 = vpack.c.b16 %v513, %v512
        %v534 = vpack.c.b16 %v515, %v514
        %v535 = vpack.c.b16 %v517, %v516
        %v536 = vpack.c.b16 %v519, %v518
        %v537 = vpack.c.b16 %v521, %v520
        %v570 = vunpack.c.l.b16 %v430
        %v571 = vunpack.c.h.b16 %v430
        %v572 = vunpack.c.l.b16 %v431
        %v573 = vunpack.c.h.b16 %v431
        %v574 = vunpack.c.l.b16 %v432
        %v575 = vunpack.c.h.b16 %v432
        %v576 = vunpack.c.l.b16 %v433
        %v577 = vunpack.c.h.b16 %v433
        %v578 = vunpack.c.l.b16 %v434
        %v579 = vunpack.c.h.b16 %v434
        %v580 = vunpack.c.l.b16 %v435
        %v581 = vunpack.c.h.b16 %v435
        %v582 = vunpack.c.l.b16 %v436
        %v583 = vunpack.c.h.b16 %v436
        %v584 = vunpack.c.l.b16 %v437
        %v585 = vunpack.c.h.b16 %v437
        %v586 = vunpack.c.l.b16 %v438
        %v587 = vunpack.c.h.b16 %v438
        %v588 = vunpack.c.l.b16 %v439
        %v589 = vunpack.c.h.b16 %v439
        %v590 = vunpack.c.l.b16 %v440
        %v591 = vunpack.c.h.b16 %v440
        %v592 = vunpack.c.l.b16 %v441
        %v593 = vunpack.c.h.b16 %v441
        %v594 = vunpack.c.l.b16 %v442
        %v595 = vunpack.c.h.b16 %v442
        %v596 = vunpack.c.l.b16 %v443
        %v597 = vunpack.c.h.b16 %v443
        %v598 = vunpack.c.l.b16 %v444
        %v599 = vunpack.c.h.b16 %v444
        %v600 = vunpack.c.l.b16 %v445
        %v601 = vunpack.c.h.b16 %v445
        %v602 = vpack.c.b16 %v572, %v570
        %v603 = vpack.c.b16 %v573, %v571
        %v604 = vpack.c.b16 %v576, %v574
        %v605 = vpack.c.b16 %v577, %v575
        %v606 = vpack.c.b16 %v580, %v578
        %v607 = vpack.c.b16 %v581, %v579
        %v608 = vpack.c.b16 %v584, %v582
        %v609 = vpack.c.b16 %v585, %v583
        %v610 = vpack.c.b16 %v588, %v586
        %v611 = vpack.c.b16 %v589, %v587
        %v612 = vpack.c.b16 %v592, %v590
        %v613 = vpack.c.b16 %v593, %v591
        %v614 = vpack.c.b16 %v596, %v594
        %v615 = vpack.c.b16 %v597, %v595
        %v616 = vpack.c.b16 %v600, %v598
        %v617 = vpack.c.b16 %v601, %v599
        %634 = vmatprep.subr.bf16.mxu0 %v617
        %635 = vmatpush1.bf16.msra.mxu0 %v616
        %636 = vmatprep.subr.bf16.mxu0 %v615
        %637 = vmatpush1.bf16.msra.mxu0 %v614
        %638 = vmatprep.subr.bf16.mxu0 %v613
        %639 = vmatpush1.bf16.msra.mxu0 %v612
        %640 = vmatprep.subr.bf16.mxu0 %v611
        %641 = vmatpush1.bf16.msra.mxu0 %v610
        %642 = vmatprep.subr.bf16.mxu0 %v609
        %643 = vmatpush1.bf16.msra.mxu0 %v608
        %644 = vmatprep.subr.bf16.mxu0 %v607
        %645 = vmatpush1.bf16.msra.mxu0 %v606
        %646 = vmatprep.subr.bf16.mxu0 %v605
        %647 = vmatpush1.bf16.msra.mxu0 %v604
        %648 = vmatprep.subr.bf16.mxu0 %v603
        %649 = vmatpush1.bf16.msra.mxu0 %v602
        %650 = vmatprep.subr.bf16.mxu0 0
        %651 = vmatpush2.bf16.msra.mxu0 0
        %652 = vmatprep.subr.bf16.mxu0 0
        %653 = vmatpush2.bf16.msra.mxu0 0
        %654 = vmatprep.subr.bf16.mxu0 0
        %655 = vmatpush2.bf16.msra.mxu0 0
        %656 = vmatprep.subr.bf16.mxu0 0
        %657 = vmatpush2.bf16.msra.mxu0 0
        %658 = vmatprep.subr.bf16.mxu0 0
        %659 = vmatpush2.bf16.msra.mxu0 0
        %660 = vmatprep.subr.bf16.mxu0 0
        %661 = vmatpush2.bf16.msra.mxu0 0
        %662 = vmatprep.subr.bf16.mxu0 0
        %663 = vmatpush2.bf16.msra.mxu0 0
        %664 = vmatprep.subr.bf16.mxu0 0
        %665 = vmatpush2.bf16.msra.mxu0 0
        %666 = vmatprep.mubr.bf16.mxu0 0
        %667 = vmatmul.mubr.bf16.gmra.mxu0 %v522
        %v668 = vpop.f32.mrf.mxu0
        %v669 = vadd.f32 %v451, %v668
        %v670 = vpop.f32.mrf.mxu0
        %v671 = vadd.f32 %v455, %v670
        %v672 = vpop.f32.mrf.mxu0
        %v673 = vadd.f32 %v451, %v672
        %v674 = vpop.f32.mrf.mxu0
        %v675 = vadd.f32 %v455, %v674
        %676 = vmatprep.mubr.bf16.mxu0 0
        %677 = vmatmul.mubr.bf16.gmra.mxu0 %v523
        %v678 = vpop.f32.mrf.mxu0
        %v679 = vadd.f32 %v451, %v678
        %v680 = vpop.f32.mrf.mxu0
        %v681 = vadd.f32 %v455, %v680
        %v682 = vpop.f32.mrf.mxu0
        %v683 = vadd.f32 %v451, %v682
        %v684 = vpop.f32.mrf.mxu0
        %v685 = vadd.f32 %v455, %v684
        %686 = vmatprep.mubr.bf16.mxu0 0
        %687 = vmatmul.mubr.bf16.gmra.mxu0 %v524
        %v688 = vpop.f32.mrf.mxu0
        %v689 = vadd.f32 %v451, %v688
        %v690 = vpop.f32.mrf.mxu0
        %v691 = vadd.f32 %v455, %v690
        %v692 = vpop.f32.mrf.mxu0
        %v693 = vadd.f32 %v451, %v692
        %v694 = vpop.f32.mrf.mxu0
        %v695 = vadd.f32 %v455, %v694
        %696 = vmatprep.mubr.bf16.mxu0 0
        %697 = vmatmul.mubr.bf16.gmra.mxu0 %v525
        %v698 = vpop.f32.mrf.mxu0
        %v699 = vadd.f32 %v451, %v698
        %v700 = vpop.f32.mrf.mxu0
        %v701 = vadd.f32 %v455, %v700
        %v702 = vpop.f32.mrf.mxu0
        %v703 = vadd.f32 %v451, %v702
        %v704 = vpop.f32.mrf.mxu0
        %v705 = vadd.f32 %v455, %v704
        %706 = vmatprep.mubr.bf16.mxu0 0
        %707 = vmatmul.mubr.bf16.gmra.mxu0 %v526
        %v708 = vpop.f32.mrf.mxu0
        %v709 = vadd.f32 %v451, %v708
        %v710 = vpop.f32.mrf.mxu0
        %v711 = vadd.f32 %v455, %v710
        %v712 = vpop.f32.mrf.mxu0
        %v713 = vadd.f32 %v451, %v712
        %v714 = vpop.f32.mrf.mxu0
        %v715 = vadd.f32 %v455, %v714
        %716 = vmatprep.mubr.bf16.mxu0 0
        %717 = vmatmul.mubr.bf16.gmra.mxu0 %v527
        %v718 = vpop.f32.mrf.mxu0
        %v719 = vadd.f32 %v451, %v718
        %v720 = vpop.f32.mrf.mxu0
        %v721 = vadd.f32 %v455, %v720
        %v722 = vpop.f32.mrf.mxu0
        %v723 = vadd.f32 %v451, %v722
        %v724 = vpop.f32.mrf.mxu0
        %v725 = vadd.f32 %v455, %v724
        %726 = vmatprep.mubr.bf16.mxu0 0
        %727 = vmatmul.mubr.bf16.gmra.mxu0 %v528
        %v728 = vpop.f32.mrf.mxu0
        %v729 = vadd.f32 %v451, %v728
        %v730 = vpop.f32.mrf.mxu0
        %v731 = vadd.f32 %v455, %v730
        %v732 = vpop.f32.mrf.mxu0
        %v733 = vadd.f32 %v451, %v732
        %v734 = vpop.f32.mrf.mxu0
        %v735 = vadd.f32 %v455, %v734
        %736 = vmatprep.mubr.bf16.mxu0 0
        %737 = vmatmul.mubr.bf16.gmra.mxu0 %v529
        %v738 = vpop.f32.mrf.mxu0
        %v739 = vadd.f32 %v451, %v738
        %v740 = vpop.f32.mrf.mxu0
        %v741 = vadd.f32 %v455, %v740
        %v742 = vpop.f32.mrf.mxu0
        %v743 = vadd.f32 %v451, %v742
        %v744 = vpop.f32.mrf.mxu0
        %v745 = vadd.f32 %v455, %v744
        %746 = vmatprep.mubr.bf16.mxu0 0
        %747 = vmatmul.mubr.bf16.gmra.mxu0 %v530
        %v748 = vpop.f32.mrf.mxu0
        %v749 = vadd.f32 %v451, %v748
        %v750 = vpop.f32.mrf.mxu0
        %v751 = vadd.f32 %v455, %v750
        %v752 = vpop.f32.mrf.mxu0
        %v753 = vadd.f32 %v451, %v752
        %v754 = vpop.f32.mrf.mxu0
        %v755 = vadd.f32 %v455, %v754
        %756 = vmatprep.mubr.bf16.mxu0 0
        %757 = vmatmul.mubr.bf16.gmra.mxu0 %v531
        %v758 = vpop.f32.mrf.mxu0
        %v759 = vadd.f32 %v451, %v758
        %v760 = vpop.f32.mrf.mxu0
        %v761 = vadd.f32 %v455, %v760
        %v762 = vpop.f32.mrf.mxu0
        %v763 = vadd.f32 %v451, %v762
        %v764 = vpop.f32.mrf.mxu0
        %v765 = vadd.f32 %v455, %v764
        %766 = vmatprep.mubr.bf16.mxu0 0
        %767 = vmatmul.mubr.bf16.gmra.mxu0 %v532
        %v768 = vpop.f32.mrf.mxu0
        %v769 = vadd.f32 %v451, %v768
        %v770 = vpop.f32.mrf.mxu0
        %v771 = vadd.f32 %v455, %v770
        %v772 = vpop.f32.mrf.mxu0
        %v773 = vadd.f32 %v451, %v772
        %v774 = vpop.f32.mrf.mxu0
        %v775 = vadd.f32 %v455, %v774
        %776 = vmatprep.mubr.bf16.mxu0 0
        %777 = vmatmul.mubr.bf16.gmra.mxu0 %v533
        %v778 = vpop.f32.mrf.mxu0
        %v779 = vadd.f32 %v451, %v778
        %v780 = vpop.f32.mrf.mxu0
        %v781 = vadd.f32 %v455, %v780
        %v782 = vpop.f32.mrf.mxu0
        %v783 = vadd.f32 %v451, %v782
        %v784 = vpop.f32.mrf.mxu0
        %v785 = vadd.f32 %v455, %v784
        %786 = vmatprep.mubr.bf16.mxu0 0
        %787 = vmatmul.mubr.bf16.gmra.mxu0 %v534
        %v788 = vpop.f32.mrf.mxu0
        %v789 = vadd.f32 %v451, %v788
        %v790 = vpop.f32.mrf.mxu0
        %v791 = vadd.f32 %v455, %v790
        %v792 = vpop.f32.mrf.mxu0
        %v793 = vadd.f32 %v451, %v792
        %v794 = vpop.f32.mrf.mxu0
        %v795 = vadd.f32 %v455, %v794
        %796 = vmatprep.mubr.bf16.mxu0 0
        %797 = vmatmul.mubr.bf16.gmra.mxu0 %v535
        %v798 = vpop.f32.mrf.mxu0
        %v799 = vadd.f32 %v451, %v798
        %v800 = vpop.f32.mrf.mxu0
        %v801 = vadd.f32 %v455, %v800
        %v802 = vpop.f32.mrf.mxu0
        %v803 = vadd.f32 %v451, %v802
        %v804 = vpop.f32.mrf.mxu0
        %v805 = vadd.f32 %v455, %v804
        %806 = vmatprep.mubr.bf16.mxu0 0
        %807 = vmatmul.mubr.bf16.gmra.mxu0 %v536
        %v808 = vpop.f32.mrf.mxu0
        %v809 = vadd.f32 %v451, %v808
        %v810 = vpop.f32.mrf.mxu0
        %v811 = vadd.f32 %v455, %v810
        %v812 = vpop.f32.mrf.mxu0
        %v813 = vadd.f32 %v451, %v812
        %v814 = vpop.f32.mrf.mxu0
        %v815 = vadd.f32 %v455, %v814
        %816 = vmatprep.mubr.bf16.mxu0 0
        %817 = vmatmul.mubr.bf16.gmra.mxu0 %v537
        %v818 = vpop.f32.mrf.mxu0
        %v819 = vadd.f32 %v451, %v818
        %v820 = vpop.f32.mrf.mxu0
        %v821 = vadd.f32 %v455, %v820
        %v822 = vpop.f32.mrf.mxu0
        %v823 = vadd.f32 %v451, %v822
        %v824 = vpop.f32.mrf.mxu0
        %v825 = vadd.f32 %v455, %v824
        %826 = vdwg.mxu0
        %v827 = vld [vmem:[%s305] sm:$0xff]
        %v828 = vld [vmem:[%s305 + $0x8] sm:$0xff]
        %v829 = vld [vmem:[%s305 + $0x10] sm:$0xff]
        %v830 = vld [vmem:[%s305 + $0x18] sm:$0xff]
        %v831 = vld [vmem:[%s305 + $0x20] sm:$0xff]
        %v832 = vld [vmem:[%s305 + $0x28] sm:$0xff]
        %v833 = vld [vmem:[%s305 + $0x30] sm:$0xff]
        %v834 = vld [vmem:[%s305 + $0x38] sm:$0xff]
        %v835 = vld [vmem:[%s305 + $0x40] sm:$0xff]
        %v836 = vld [vmem:[%s305 + $0x48] sm:$0xff]
        %v837 = vld [vmem:[%s305 + $0x50] sm:$0xff]
        %v838 = vld [vmem:[%s305 + $0x58] sm:$0xff]
        %v839 = vld [vmem:[%s305 + $0x60] sm:$0xff]
        %v840 = vld [vmem:[%s305 + $0x68] sm:$0xff]
        %v841 = vld [vmem:[%s305 + $0x70] sm:$0xff]
        %v842 = vld [vmem:[%s305 + $0x78] sm:$0xff]
        %v843 = vld [vmem:[%s305 + $0x80] sm:$0xff]
        %v844 = vld [vmem:[%s305 + $0x88] sm:$0xff]
        %v845 = vld [vmem:[%s305 + $0x90] sm:$0xff]
        %v846 = vld [vmem:[%s305 + $0x98] sm:$0xff]
        %v847 = vld [vmem:[%s305 + $0xa0] sm:$0xff]
        %v848 = vld [vmem:[%s305 + $0xa8] sm:$0xff]
        %v849 = vld [vmem:[%s305 + $0xb0] sm:$0xff]
        %v850 = vld [vmem:[%s305 + $0xb8] sm:$0xff]
        %v851 = vld [vmem:[%s305 + $0xc0] sm:$0xff]
        %v852 = vld [vmem:[%s305 + $0xc8] sm:$0xff]
        %v853 = vld [vmem:[%s305 + $0xd0] sm:$0xff]
        %v854 = vld [vmem:[%s305 + $0xd8] sm:$0xff]
        %v855 = vld [vmem:[%s305 + $0xe0] sm:$0xff]
        %v856 = vld [vmem:[%s305 + $0xe8] sm:$0xff]
        %v857 = vld [vmem:[%s305 + $0xf0] sm:$0xff]
        %v858 = vld [vmem:[%s305 + $0xf8] sm:$0xff]
        %vm859 = vcmp.gt.f32.partialorder %v827, 0.5
        %vm860 = vcmp.gt.f32.partialorder %v828, 0.5
        %vm861 = vcmp.gt.f32.partialorder %v829, 0.5
        %vm862 = vcmp.gt.f32.partialorder %v830, 0.5
        %vm863 = vcmp.gt.f32.partialorder %v831, 0.5
        %vm864 = vcmp.gt.f32.partialorder %v832, 0.5
        %vm865 = vcmp.gt.f32.partialorder %v833, 0.5
        %vm866 = vcmp.gt.f32.partialorder %v834, 0.5
        %vm867 = vcmp.gt.f32.partialorder %v835, 0.5
        %vm868 = vcmp.gt.f32.partialorder %v836, 0.5
        %vm869 = vcmp.gt.f32.partialorder %v837, 0.5
        %vm870 = vcmp.gt.f32.partialorder %v838, 0.5
        %vm871 = vcmp.gt.f32.partialorder %v839, 0.5
        %vm872 = vcmp.gt.f32.partialorder %v840, 0.5
        %vm873 = vcmp.gt.f32.partialorder %v841, 0.5
        %vm874 = vcmp.gt.f32.partialorder %v842, 0.5
        %vm875 = vcmp.gt.f32.partialorder %v843, 0.5
        %vm876 = vcmp.gt.f32.partialorder %v844, 0.5
        %vm877 = vcmp.gt.f32.partialorder %v845, 0.5
        %vm878 = vcmp.gt.f32.partialorder %v846, 0.5
        %vm879 = vcmp.gt.f32.partialorder %v847, 0.5
        %vm880 = vcmp.gt.f32.partialorder %v848, 0.5
        %vm881 = vcmp.gt.f32.partialorder %v849, 0.5
        %vm882 = vcmp.gt.f32.partialorder %v850, 0.5
        %vm883 = vcmp.gt.f32.partialorder %v851, 0.5
        %vm884 = vcmp.gt.f32.partialorder %v852, 0.5
        %vm885 = vcmp.gt.f32.partialorder %v853, 0.5
        %vm886 = vcmp.gt.f32.partialorder %v854, 0.5
        %vm887 = vcmp.gt.f32.partialorder %v855, 0.5
        %vm888 = vcmp.gt.f32.partialorder %v856, 0.5
        %vm889 = vcmp.gt.f32.partialorder %v857, 0.5
        %vm890 = vcmp.gt.f32.partialorder %v858, 0.5
        %v891 = vsel %vm859, 1, 0
        %v892 = vsel %vm860, 1, 0
        %v893 = vsel %vm861, 1, 0
        %v894 = vsel %vm862, 1, 0
        %v895 = vsel %vm863, 1, 0
        %v896 = vsel %vm864, 1, 0
        %v897 = vsel %vm865, 1, 0
        %v898 = vsel %vm866, 1, 0
        %v899 = vsel %vm867, 1, 0
        %v900 = vsel %vm868, 1, 0
        %v901 = vsel %vm869, 1, 0
        %v902 = vsel %vm870, 1, 0
        %v903 = vsel %vm871, 1, 0
        %v904 = vsel %vm872, 1, 0
        %v905 = vsel %vm873, 1, 0
        %v906 = vsel %vm874, 1, 0
        %v907 = vsel %vm875, 1, 0
        %v908 = vsel %vm876, 1, 0
        %v909 = vsel %vm877, 1, 0
        %v910 = vsel %vm878, 1, 0
        %v911 = vsel %vm879, 1, 0
        %v912 = vsel %vm880, 1, 0
        %v913 = vsel %vm881, 1, 0
        %v914 = vsel %vm882, 1, 0
        %v915 = vsel %vm883, 1, 0
        %v916 = vsel %vm884, 1, 0
        %v917 = vsel %vm885, 1, 0
        %v918 = vsel %vm886, 1, 0
        %v919 = vsel %vm887, 1, 0
        %v920 = vsel %vm888, 1, 0
        %v921 = vsel %vm889, 1, 0
        %v922 = vsel %vm890, 1, 0
        %923 = vset.pattern.permute.xlu0 0
        %924 = vperm.xlu0 %923, %v891
        %v925 = vpop.permute.xlu0 %924
        %926 = vset.pattern.permute.xlu0 0
        %927 = vperm.xlu0 %926, %v892
        %v928 = vpop.permute.xlu0 %927
        %929 = vset.pattern.permute.xlu0 0
        %930 = vperm.xlu0 %929, %v893
        %v931 = vpop.permute.xlu0 %930
        %932 = vset.pattern.permute.xlu0 0
        %933 = vperm.xlu0 %932, %v894
        %v934 = vpop.permute.xlu0 %933
        %935 = vset.pattern.permute.xlu0 0
        %936 = vperm.xlu0 %935, %v895
        %v937 = vpop.permute.xlu0 %936
        %938 = vset.pattern.permute.xlu0 0
        %939 = vperm.xlu0 %938, %v896
        %v940 = vpop.permute.xlu0 %939
        %941 = vset.pattern.permute.xlu0 0
        %942 = vperm.xlu0 %941, %v897
        %v943 = vpop.permute.xlu0 %942
        %944 = vset.pattern.permute.xlu0 0
        %945 = vperm.xlu0 %944, %v898
        %v946 = vpop.permute.xlu0 %945
        %947 = vset.pattern.permute.xlu0 0
        %948 = vperm.xlu0 %947, %v899
        %v949 = vpop.permute.xlu0 %948
        %950 = vset.pattern.permute.xlu0 0
        %951 = vperm.xlu0 %950, %v900
        %v952 = vpop.permute.xlu0 %951
        %953 = vset.pattern.permute.xlu0 0
        %954 = vperm.xlu0 %953, %v901
        %v955 = vpop.permute.xlu0 %954
        %956 = vset.pattern.permute.xlu0 0
        %957 = vperm.xlu0 %956, %v902
        %v958 = vpop.permute.xlu0 %957
        %959 = vset.pattern.permute.xlu0 0
        %960 = vperm.xlu0 %959, %v903
        %v961 = vpop.permute.xlu0 %960
        %962 = vset.pattern.permute.xlu0 0
        %963 = vperm.xlu0 %962, %v904
        %v964 = vpop.permute.xlu0 %963
        %965 = vset.pattern.permute.xlu0 0
        %966 = vperm.xlu0 %965, %v905
        %v967 = vpop.permute.xlu0 %966
        %968 = vset.pattern.permute.xlu0 0
        %969 = vperm.xlu0 %968, %v906
        %v970 = vpop.permute.xlu0 %969
        %971 = vset.pattern.permute.xlu0 0
        %972 = vperm.xlu0 %971, %v907
        %v973 = vpop.permute.xlu0 %972
        %974 = vset.pattern.permute.xlu0 0
        %975 = vperm.xlu0 %974, %v908
        %v976 = vpop.permute.xlu0 %975
        %977 = vset.pattern.permute.xlu0 0
        %978 = vperm.xlu0 %977, %v909
        %v979 = vpop.permute.xlu0 %978
        %980 = vset.pattern.permute.xlu0 0
        %981 = vperm.xlu0 %980, %v910
        %v982 = vpop.permute.xlu0 %981
        %983 = vset.pattern.permute.xlu0 0
        %984 = vperm.xlu0 %983, %v911
        %v985 = vpop.permute.xlu0 %984
        %986 = vset.pattern.permute.xlu0 0
        %987 = vperm.xlu0 %986, %v912
        %v988 = vpop.permute.xlu0 %987
        %989 = vset.pattern.permute.xlu0 0
        %990 = vperm.xlu0 %989, %v913
        %v991 = vpop.permute.xlu0 %990
        %992 = vset.pattern.permute.xlu0 0
        %993 = vperm.xlu0 %992, %v914
        %v994 = vpop.permute.xlu0 %993
        %995 = vset.pattern.permute.xlu0 0
        %996 = vperm.xlu0 %995, %v915
        %v997 = vpop.permute.xlu0 %996
        %998 = vset.pattern.permute.xlu0 0
        %999 = vperm.xlu0 %998, %v916
        %v1000 = vpop.permute.xlu0 %999
        %1001 = vset.pattern.permute.xlu0 0
        %1002 = vperm.xlu0 %1001, %v917
        %v1003 = vpop.permute.xlu0 %1002
        %1004 = vset.pattern.permute.xlu0 0
        %1005 = vperm.xlu0 %1004, %v918
        %v1006 = vpop.permute.xlu0 %1005
        %1007 = vset.pattern.permute.xlu0 0
        %1008 = vperm.xlu0 %1007, %v919
        %v1009 = vpop.permute.xlu0 %1008
        %1010 = vset.pattern.permute.xlu0 0
        %1011 = vperm.xlu0 %1010, %v920
        %v1012 = vpop.permute.xlu0 %1011
        %1013 = vset.pattern.permute.xlu0 0
        %1014 = vperm.xlu0 %1013, %v921
        %v1015 = vpop.permute.xlu0 %1014
        %1016 = vset.pattern.permute.xlu0 0
        %1017 = vperm.xlu0 %1016, %v922
        %v1018 = vpop.permute.xlu0 %1017
        %vm1019 = vcmp.eq.s32.totalorder %v925, 1
        %vm1020 = vcmp.eq.s32.totalorder %v928, 1
        %vm1021 = vcmp.eq.s32.totalorder %v931, 1
        %vm1022 = vcmp.eq.s32.totalorder %v934, 1
        %vm1023 = vcmp.eq.s32.totalorder %v937, 1
        %vm1024 = vcmp.eq.s32.totalorder %v940, 1
        %vm1025 = vcmp.eq.s32.totalorder %v943, 1
        %vm1026 = vcmp.eq.s32.totalorder %v946, 1
        %vm1027 = vcmp.eq.s32.totalorder %v949, 1
        %vm1028 = vcmp.eq.s32.totalorder %v952, 1
        %vm1029 = vcmp.eq.s32.totalorder %v955, 1
        %vm1030 = vcmp.eq.s32.totalorder %v958, 1
        %vm1031 = vcmp.eq.s32.totalorder %v961, 1
        %vm1032 = vcmp.eq.s32.totalorder %v964, 1
        %vm1033 = vcmp.eq.s32.totalorder %v967, 1
        %vm1034 = vcmp.eq.s32.totalorder %v970, 1
        %vm1035 = vcmp.eq.s32.totalorder %v973, 1
        %vm1036 = vcmp.eq.s32.totalorder %v976, 1
        %vm1037 = vcmp.eq.s32.totalorder %v979, 1
        %vm1038 = vcmp.eq.s32.totalorder %v982, 1
        %vm1039 = vcmp.eq.s32.totalorder %v985, 1
        %vm1040 = vcmp.eq.s32.totalorder %v988, 1
        %vm1041 = vcmp.eq.s32.totalorder %v991, 1
        %vm1042 = vcmp.eq.s32.totalorder %v994, 1
        %vm1043 = vcmp.eq.s32.totalorder %v997, 1
        %vm1044 = vcmp.eq.s32.totalorder %v1000, 1
        %vm1045 = vcmp.eq.s32.totalorder %v1003, 1
        %vm1046 = vcmp.eq.s32.totalorder %v1006, 1
        %vm1047 = vcmp.eq.s32.totalorder %v1009, 1
        %vm1048 = vcmp.eq.s32.totalorder %v1012, 1
        %vm1049 = vcmp.eq.s32.totalorder %v1015, 1
        %vm1050 = vcmp.eq.s32.totalorder %v1018, 1
        %v1051 = vsel %vm1019, %v669, %v671
        %v1052 = vsel %vm1020, %v673, %v675
        %v1053 = vsel %vm1021, %v679, %v681
        %v1054 = vsel %vm1022, %v683, %v685
        %v1055 = vsel %vm1023, %v689, %v691
        %v1056 = vsel %vm1024, %v693, %v695
        %v1057 = vsel %vm1025, %v699, %v701
        %v1058 = vsel %vm1026, %v703, %v705
        %v1059 = vsel %vm1027, %v709, %v711
        %v1060 = vsel %vm1028, %v713, %v715
        %v1061 = vsel %vm1029, %v719, %v721
        %v1062 = vsel %vm1030, %v723, %v725
        %v1063 = vsel %vm1031, %v729, %v731
        %v1064 = vsel %vm1032, %v733, %v735
        %v1065 = vsel %vm1033, %v739, %v741
        %v1066 = vsel %vm1034, %v743, %v745
        %v1067 = vsel %vm1035, %v749, %v751
        %v1068 = vsel %vm1036, %v753, %v755
        %v1069 = vsel %vm1037, %v759, %v761
        %v1070 = vsel %vm1038, %v763, %v765
        %v1071 = vsel %vm1039, %v769, %v771
        %v1072 = vsel %vm1040, %v773, %v775
        %v1073 = vsel %vm1041, %v779, %v781
        %v1074 = vsel %vm1042, %v783, %v785
        %v1075 = vsel %vm1043, %v789, %v791
        %v1076 = vsel %vm1044, %v793, %v795
        %v1077 = vsel %vm1045, %v799, %v801
        %v1078 = vsel %vm1046, %v803, %v805
        %v1079 = vsel %vm1047, %v809, %v811
        %v1080 = vsel %vm1048, %v813, %v815
        %v1081 = vsel %vm1049, %v819, %v821
        %v1082 = vsel %vm1050, %v823, %v825
        %v1083 = vld [vmem:[%s311] sm:$0xff]
        %v1084 = vld [vmem:[%s311 + $0x8] sm:$0xff]
        %v1085 = vld [vmem:[%s311 + $0x10] sm:$0xff]
        %v1086 = vld [vmem:[%s311 + $0x18] sm:$0xff]
        %v1087 = vld [vmem:[%s311 + $0x20] sm:$0xff]
        %v1088 = vld [vmem:[%s311 + $0x28] sm:$0xff]
        %v1089 = vld [vmem:[%s311 + $0x30] sm:$0xff]
        %v1090 = vld [vmem:[%s311 + $0x38] sm:$0xff]
        %v1091 = vld [vmem:[%s311 + $0x40] sm:$0xff]
        %v1092 = vld [vmem:[%s311 + $0x48] sm:$0xff]
        %v1093 = vld [vmem:[%s311 + $0x50] sm:$0xff]
        %v1094 = vld [vmem:[%s311 + $0x58] sm:$0xff]
        %v1095 = vld [vmem:[%s311 + $0x60] sm:$0xff]
        %v1096 = vld [vmem:[%s311 + $0x68] sm:$0xff]
        %v1097 = vld [vmem:[%s311 + $0x70] sm:$0xff]
        %v1098 = vld [vmem:[%s311 + $0x78] sm:$0xff]
        %v1099 = vld [vmem:[%s311 + $0x80] sm:$0xff]
        %v1100 = vld [vmem:[%s311 + $0x88] sm:$0xff]
        %v1101 = vld [vmem:[%s311 + $0x90] sm:$0xff]
        %v1102 = vld [vmem:[%s311 + $0x98] sm:$0xff]
        %v1103 = vld [vmem:[%s311 + $0xa0] sm:$0xff]
        %v1104 = vld [vmem:[%s311 + $0xa8] sm:$0xff]
        %v1105 = vld [vmem:[%s311 + $0xb0] sm:$0xff]
        %v1106 = vld [vmem:[%s311 + $0xb8] sm:$0xff]
        %v1107 = vld [vmem:[%s311 + $0xc0] sm:$0xff]
        %v1108 = vld [vmem:[%s311 + $0xc8] sm:$0xff]
        %v1109 = vld [vmem:[%s311 + $0xd0] sm:$0xff]
        %v1110 = vld [vmem:[%s311 + $0xd8] sm:$0xff]
        %v1111 = vld [vmem:[%s311 + $0xe0] sm:$0xff]
        %v1112 = vld [vmem:[%s311 + $0xe8] sm:$0xff]
        %v1113 = vld [vmem:[%s311 + $0xf0] sm:$0xff]
        %v1114 = vld [vmem:[%s311 + $0xf8] sm:$0xff]
        %1116 = vset.pattern.permute.xlu0 0
        %1117 = vperm.xlu0 %1116, %v1083
        %v1118 = vpop.permute.xlu0 %1117
        %1121 = vset.pattern.permute.xlu0 0
        %1122 = vperm.xlu0 %1121, %v1084
        %v1123 = vpop.permute.xlu0 %1122
        %1126 = vset.pattern.permute.xlu0 0
        %1127 = vperm.xlu0 %1126, %v1085
        %v1128 = vpop.permute.xlu0 %1127
        %1131 = vset.pattern.permute.xlu0 0
        %1132 = vperm.xlu0 %1131, %v1086
        %v1133 = vpop.permute.xlu0 %1132
        %1136 = vset.pattern.permute.xlu0 0
        %1137 = vperm.xlu0 %1136, %v1087
        %v1138 = vpop.permute.xlu0 %1137
        %1141 = vset.pattern.permute.xlu0 0
        %1142 = vperm.xlu0 %1141, %v1088
        %v1143 = vpop.permute.xlu0 %1142
        %1146 = vset.pattern.permute.xlu0 0
        %1147 = vperm.xlu0 %1146, %v1089
        %v1148 = vpop.permute.xlu0 %1147
        %1151 = vset.pattern.permute.xlu0 0
        %1152 = vperm.xlu0 %1151, %v1090
        %v1153 = vpop.permute.xlu0 %1152
        %1156 = vset.pattern.permute.xlu0 0
        %1157 = vperm.xlu0 %1156, %v1091
        %v1158 = vpop.permute.xlu0 %1157
        %1161 = vset.pattern.permute.xlu0 0
        %1162 = vperm.xlu0 %1161, %v1092
        %v1163 = vpop.permute.xlu0 %1162
        %1166 = vset.pattern.permute.xlu0 0
        %1167 = vperm.xlu0 %1166, %v1093
        %v1168 = vpop.permute.xlu0 %1167
        %1171 = vset.pattern.permute.xlu0 0
        %1172 = vperm.xlu0 %1171, %v1094
        %v1173 = vpop.permute.xlu0 %1172
        %1176 = vset.pattern.permute.xlu0 0
        %1177 = vperm.xlu0 %1176, %v1095
        %v1178 = vpop.permute.xlu0 %1177
        %1181 = vset.pattern.permute.xlu0 0
        %1182 = vperm.xlu0 %1181, %v1096
        %v1183 = vpop.permute.xlu0 %1182
        %1186 = vset.pattern.permute.xlu0 0
        %1187 = vperm.xlu0 %1186, %v1097
        %v1188 = vpop.permute.xlu0 %1187
        %1191 = vset.pattern.permute.xlu0 0
        %1192 = vperm.xlu0 %1191, %v1098
        %v1193 = vpop.permute.xlu0 %1192
        %1196 = vset.pattern.permute.xlu0 0
        %1197 = vperm.xlu0 %1196, %v1099
        %v1198 = vpop.permute.xlu0 %1197
        %1201 = vset.pattern.permute.xlu0 0
        %1202 = vperm.xlu0 %1201, %v1100
        %v1203 = vpop.permute.xlu0 %1202
        %1206 = vset.pattern.permute.xlu0 0
        %1207 = vperm.xlu0 %1206, %v1101
        %v1208 = vpop.permute.xlu0 %1207
        %1211 = vset.pattern.permute.xlu0 0
        %1212 = vperm.xlu0 %1211, %v1102
        %v1213 = vpop.permute.xlu0 %1212
        %1216 = vset.pattern.permute.xlu0 0
        %1217 = vperm.xlu0 %1216, %v1103
        %v1218 = vpop.permute.xlu0 %1217
        %1221 = vset.pattern.permute.xlu0 0
        %1222 = vperm.xlu0 %1221, %v1104
        %v1223 = vpop.permute.xlu0 %1222
        %1226 = vset.pattern.permute.xlu0 0
        %1227 = vperm.xlu0 %1226, %v1105
        %v1228 = vpop.permute.xlu0 %1227
        %1231 = vset.pattern.permute.xlu0 0
        %1232 = vperm.xlu0 %1231, %v1106
        %v1233 = vpop.permute.xlu0 %1232
        %1236 = vset.pattern.permute.xlu0 0
        %1237 = vperm.xlu0 %1236, %v1107
        %v1238 = vpop.permute.xlu0 %1237
        %1241 = vset.pattern.permute.xlu0 0
        %1242 = vperm.xlu0 %1241, %v1108
        %v1243 = vpop.permute.xlu0 %1242
        %1246 = vset.pattern.permute.xlu0 0
        %1247 = vperm.xlu0 %1246, %v1109
        %v1248 = vpop.permute.xlu0 %1247
        %1251 = vset.pattern.permute.xlu0 0
        %1252 = vperm.xlu0 %1251, %v1110
        %v1253 = vpop.permute.xlu0 %1252
        %1256 = vset.pattern.permute.xlu0 0
        %1257 = vperm.xlu0 %1256, %v1111
        %v1258 = vpop.permute.xlu0 %1257
        %1261 = vset.pattern.permute.xlu0 0
        %1262 = vperm.xlu0 %1261, %v1112
        %v1263 = vpop.permute.xlu0 %1262
        %1266 = vset.pattern.permute.xlu0 0
        %1267 = vperm.xlu0 %1266, %v1113
        %v1268 = vpop.permute.xlu0 %1267
        %1271 = vset.pattern.permute.xlu0 0
        %1272 = vperm.xlu0 %1271, %v1114
        %v1273 = vpop.permute.xlu0 %1272
        %v1275 = vmul.f32 %v1051, %v1118
        %v1276 = vmul.f32 %v1052, %v1123
        %v1277 = vmul.f32 %v1053, %v1128
        %v1278 = vmul.f32 %v1054, %v1133
        %v1279 = vmul.f32 %v1055, %v1138
        %v1280 = vmul.f32 %v1056, %v1143
        %v1281 = vmul.f32 %v1057, %v1148
        %v1282 = vmul.f32 %v1058, %v1153
        %v1283 = vmul.f32 %v1059, %v1158
        %v1284 = vmul.f32 %v1060, %v1163
        %v1285 = vmul.f32 %v1061, %v1168
        %v1286 = vmul.f32 %v1062, %v1173
        %v1287 = vmul.f32 %v1063, %v1178
        %v1288 = vmul.f32 %v1064, %v1183
        %v1289 = vmul.f32 %v1065, %v1188
        %v1290 = vmul.f32 %v1066, %v1193
        %v1291 = vmul.f32 %v1067, %v1198
        %v1292 = vmul.f32 %v1068, %v1203
        %v1293 = vmul.f32 %v1069, %v1208
        %v1294 = vmul.f32 %v1070, %v1213
        %v1295 = vmul.f32 %v1071, %v1218
        %v1296 = vmul.f32 %v1072, %v1223
        %v1297 = vmul.f32 %v1073, %v1228
        %v1298 = vmul.f32 %v1074, %v1233
        %v1299 = vmul.f32 %v1075, %v1238
        %v1300 = vmul.f32 %v1076, %v1243
        %v1301 = vmul.f32 %v1077, %v1248
        %v1302 = vmul.f32 %v1078, %v1253
        %v1303 = vmul.f32 %v1079, %v1258
        %v1304 = vmul.f32 %v1080, %v1263
        %v1305 = vmul.f32 %v1081, %v1268
        %v1306 = vmul.f32 %v1082, %v1273
        %1307 = vst [vmem:[#allocation2] sm:$0xff] %v1275
        %1308 = vst [vmem:[#allocation2 + $0x8] sm:$0xff] %v1276
        %1309 = vst [vmem:[#allocation2 + $0x10] sm:$0xff] %v1277
        %1310 = vst [vmem:[#allocation2 + $0x18] sm:$0xff] %v1278
        %1311 = vst [vmem:[#allocation2 + $0x20] sm:$0xff] %v1279
        %1312 = vst [vmem:[#allocation2 + $0x28] sm:$0xff] %v1280
        %1313 = vst [vmem:[#allocation2 + $0x30] sm:$0xff] %v1281
        %1314 = vst [vmem:[#allocation2 + $0x38] sm:$0xff] %v1282
        %1315 = vst [vmem:[#allocation2 + $0x40] sm:$0xff] %v1283
        %1316 = vst [vmem:[#allocation2 + $0x48] sm:$0xff] %v1284
        %1317 = vst [vmem:[#allocation2 + $0x50] sm:$0xff] %v1285
        %1318 = vst [vmem:[#allocation2 + $0x58] sm:$0xff] %v1286
        %1319 = vst [vmem:[#allocation2 + $0x60] sm:$0xff] %v1287
        %1320 = vst [vmem:[#allocation2 + $0x68] sm:$0xff] %v1288
        %1321 = vst [vmem:[#allocation2 + $0x70] sm:$0xff] %v1289
        %1322 = vst [vmem:[#allocation2 + $0x78] sm:$0xff] %v1290
        %1323 = vst [vmem:[#allocation2 + $0x80] sm:$0xff] %v1291
        %1324 = vst [vmem:[#allocation2 + $0x88] sm:$0xff] %v1292
        %1325 = vst [vmem:[#allocation2 + $0x90] sm:$0xff] %v1293
        %1326 = vst [vmem:[#allocation2 + $0x98] sm:$0xff] %v1294
        %1327 = vst [vmem:[#allocation2 + $0xa0] sm:$0xff] %v1295
        %1328 = vst [vmem:[#allocation2 + $0xa8] sm:$0xff] %v1296
        %1329 = vst [vmem:[#allocation2 + $0xb0] sm:$0xff] %v1297
        %1330 = vst [vmem:[#allocation2 + $0xb8] sm:$0xff] %v1298
        %1331 = vst [vmem:[#allocation2 + $0xc0] sm:$0xff] %v1299
        %1332 = vst [vmem:[#allocation2 + $0xc8] sm:$0xff] %v1300
        %1333 = vst [vmem:[#allocation2 + $0xd0] sm:$0xff] %v1301
        %1334 = vst [vmem:[#allocation2 + $0xd8] sm:$0xff] %v1302
        %1335 = vst [vmem:[#allocation2 + $0xe0] sm:$0xff] %v1303
        %1336 = vst [vmem:[#allocation2 + $0xe8] sm:$0xff] %v1304
        %1337 = vst [vmem:[#allocation2 + $0xf0] sm:$0xff] %v1305
        %1338 = vst [vmem:[#allocation2 + $0xf8] sm:$0xff] %v1306
        %s1339 = smul.u32 %s25, 256
        loop: start=0, step=1, limit=256
        $region49: #{tpu_custom_call.1} parent=43 // loop_pre_header
          _
        $region50: #{tpu_custom_call.1} parent=43 // loop_header
          %s1341 = sphi 0, %s1345
          %p1342 = scmp.ge.s32.totalorder %s1341, 256
        $region51: #{tpu_custom_call.1} parent=43 // loop_header_branch
          %1344 = sbr.rel (%p1342) target = $region55
        $region52: #{tpu_custom_call.1} parent=43 // loop_body
          %s1346 = sadd.s32 %s1339, %s1341
          %s1347 = sld [smem:[#allocation4 + %s1346]]
          %s1348 = scalar_lea.vmem [#allocation2], %s1341
          %v1349 = vld [vmem:[%s1348] sm:$0x1]
          %s1350 = scalar_lea.vmem [#allocation5], %s1347
          %v1351 = vld [vmem:[%s1350] sm:$0x1]
          %v1352 = vadd.f32 %v1351, %v1349
          %1353 = vst [vmem:[%s1350] sm:$0x1] %v1352
        $region53: #{tpu_custom_call.1} parent=43 // loop_footer
          %s1345 = sadd.s32 1, %s1341
        $region54: #{tpu_custom_call.1} parent=43 // loop_footer_branch
          %1340 = sbr.rel target = $region50
        $region55: #{tpu_custom_call.1} parent=43 // loop_exit
          _
        // Predicated region
        $region56: #{tpu_custom_call.1} parent=43 // pred_check
          %p1354 = pneg %p184
        $region57: #{tpu_custom_call.1} parent=43 // pred_check_branch
          %1356 = sbr.rel (%p1354) target = $region59
        $region58: #{tpu_custom_call.1} parent=43 // pred_region
          %s1358 = ssub.s32 2048, 2048
          %1359 = vsyncadd [#allocation6], %s1358
          %s1360 = sshll.u32 [#allocation5], 4
          %s1361 = int_to_ptr.vmem [resolvable:$true] %s1360
          %1366 = dma.vmem_to_hbm [thread:$0]  %s1361, 2048, %s7, [#allocation6], 128, 128, 8
        $region59: #{tpu_custom_call.1} parent=43 // pred_fallthru
          _
        // Predicated region
        $region60: #{tpu_custom_call.1} parent=43 // pred_check
          %p1367 = pneg %p184
        $region61: #{tpu_custom_call.1} parent=43 // pred_check_branch
          %1369 = sbr.rel (%p1367) target = $region63
        $region62: #{tpu_custom_call.1} parent=43 // pred_region
          %1370 = dma.done [#allocation6], 2048
        $region63: #{tpu_custom_call.1} parent=43 // pred_fallthru
          _
      $region44: #{tpu_custom_call.1} parent=5 // pred_fallthru
        _
      %p1371 = scmp.le.s32.totalorder 2, %s20
      // Predicated region
      $region64: #{tpu_custom_call.1} parent=5 // pred_check
        %p1372 = pneg %p1371
      $region65: #{tpu_custom_call.1} parent=5 // pred_check_branch
        %1374 = sbr.rel (%p1372) target = $region67
      $region66: #{tpu_custom_call.1} parent=5 // pred_region
        %s1375 = ssub.s32 %s20, 2
      $region67: #{tpu_custom_call.1} parent=5 // pred_fallthru
        _
    $region6: #{tpu_custom_call.1} parent=1 // loop_footer
      %s24 = sadd.s32 1, %s20
    $region7: #{tpu_custom_call.1} parent=1 // loop_footer_branch
      %19 = sbr.rel target = $region3
    $region8: #{tpu_custom_call.1} parent=1 // loop_exit
      _
    %1376 = vsyncpa [#allocation6], 1
    %s1377 = scalar_lea.sflag [#allocation6], 1
    %1378 = vsyncpa %s1377, 1

</llo_original>
